<compile_context>
chip_gen: v7x
topology: tpu7x:2x2x1
jax: 0.10.0
libtpu: 0.0.40
codegen_flags: <defaults>
</compile_context>

<pallas_src>
import math

import jax
import jax.numpy as jnp
from jax.experimental import pallas as pl
from jax.experimental.pallas import tpu as pltpu


# Tap order: t = kh*3 + kw, offset (dh, dw) = (kh-1, kw-1).  Matches the packed
# weight layout produced by _pack_conv_params (tap-major, ci-minor).
_OFFSETS = [(kh - 1, kw - 1) for kh in range(3) for kw in range(3)]


def _make_kernel(Cp, W, lanes, mxu_dtype):
    n_tap_rows = 9 * Cp

    def kernel(x_ref, w1_ref, w2_ref, m_ref, o_ref, taps_ref):
        # x_ref/o_ref : (Cp, lanes)        activations, batch folded into lanes
        # w*_ref      : (Cp, 9*Cp + 8)     packed conv weights + bias column
        # m_ref       : (9, lanes)         precomputed border masks
        # taps_ref    : (9*Cp + 8, lanes)  VMEM scratch: stacked taps + ones row
        x = x_ref[...]                                        # f32

        # Constant "ones" row turning the bias into an extra matmul column.
        bias_rows = (jax.lax.broadcasted_iota(jnp.int32, (8, lanes), 0) == 0
                     ).astype(mxu_dtype)
        taps_ref[pl.ds(n_tap_rows, 8), :] = bias_rows

        def conv3x3(h_f32, w_ref):
            hm = h_f32.astype(mxu_dtype)                      # cast BEFORE taps
            for t, (dh, dw) in enumerate(_OFFSETS):
                d = dh * W + dw
                if d == 0:
                    tap = hm
                else:
                    # shifted[q] = hm[(q + d) mod lanes]; wrap-around and
                    # image-boundary lanes are zeroed by the precomputed mask.
                    shifted = pltpu.roll(hm, shift=(-d) % lanes, axis=1)
                    tap = shifted * m_ref[pl.ds(t, 1), :]
                taps_ref[pl.ds(t * Cp, Cp), :] = tap
            # One fused MXU matmul per conv (bias included via the ones row):
            # (Cp, 9*Cp+8) @ (9*Cp+8, lanes) -> (Cp, lanes), f32 accumulation.
            return jnp.dot(w_ref[...], taps_ref[...],
                           preferred_element_type=jnp.float32)

        h = jnp.maximum(x, 0.0)                               # relu (f32 VPU)
        h = conv3x3(h, w1_ref)                                # conv1 + bias
        h = jnp.maximum(h, 0.0)                               # relu
        h = conv3x3(h, w2_ref)                                # conv2 + bias
        o_ref[...] = (h + x).astype(o_ref.dtype)              # residual, lane-dense

    return kernel


def _pack_conv_params(w_oihw, b, Cp, mxu_dtype):
    """PyTorch (C,C,3,3)+(C,) -> (Cp, 9*Cp + 8): tap-major/ci-minor + bias col."""
    c_out, c_in, _, _ = w_oihw.shape
    w, bias = w_oihw, b
    if Cp != c_out or Cp != c_in:
        w = jnp.pad(w, ((0, Cp - c_out), (0, Cp - c_in), (0, 0), (0, 0)))
        bias = jnp.pad(bias, (0, Cp - c_out))
    wp = jnp.transpose(w, (0, 2, 3, 1)).reshape(Cp, 9 * Cp)
    bias_cols = jnp.zeros((Cp, 8), wp.dtype).at[:, 0].set(bias)
    return jnp.concatenate([wp, bias_cols], axis=1).astype(mxu_dtype)


def _border_masks(H, W, lanes, mxu_dtype):
    """(9, lanes) 0/1 tap-validity masks; lane q belongs to image q // (H*W)."""
    p = jnp.arange(lanes, dtype=jnp.int32) % (H * W)
    row, col = p // W, p % W
    rows = [((row + dh >= 0) & (row + dh < H) & (col + dw >= 0) & (col + dw < W))
            for dh, dw in _OFFSETS]
    return jnp.stack(rows, axis=0).astype(mxu_dtype)


def _images_per_step(N, HW, max_lanes=2048):
    """Largest group size that divides N, keeps >=2 grid steps (v7x's 2 TCs)
    when N allows, and caps the per-step lane width."""
    nb_cap = max(1, max_lanes // HW)
    best = 1
    for nb in range(1, N + 1):
        if N % nb or nb > nb_cap:
            continue
        if N // nb >= 2 or N == 1:
            best = nb
    return best


def basic_block_forward(x_nchw, w1, b1, w2, b2, *,
                        mxu_dtype=jnp.float32, images_per_step=None):
    """x_nchw: (N, C, H, W) f32; w*: (C, C, 3, 3) PyTorch OIHW; b*: (C,).

    Set mxu_dtype=jnp.bfloat16 on v6e/v7x for bf16 matmul operands + bf16 tap
    pipeline (f32 accumulation); loosen the comparison tolerance accordingly.
    """
    N, C, H, W = x_nchw.shape
    HW = H * W
    Cp = ((max(C, 8) + 7) // 8) * 8            # pad channels to full sublane tile

    nb = images_per_step or _images_per_step(N, HW)
    if N % nb:
        raise ValueError("images_per_step must divide the batch size")
    lanes = nb * HW
    num_groups = N // nb

    # Layout plumbing (wrapper-side): (N, C, H, W) -> (Cp, N*HW), lane-dense.
    x_flat = x_nchw.reshape(N, C, HW)
    if Cp != C:
        x_flat = jnp.pad(x_flat, ((0, 0), (0, Cp - C), (0, 0)))
    x_lanes = jnp.transpose(x_flat, (1, 0, 2)).reshape(Cp, N * HW)

    w1p = _pack_conv_params(w1, b1, Cp, mxu_dtype)
    w2p = _pack_conv_params(w2, b2, Cp, mxu_dtype)
    masks = _border_masks(H, W, lanes, mxu_dtype)

    # VMEM budget guard (weights/masks conservatively counted double-buffered,
    # tap scratch single-buffered, plus headroom for live f32 intermediates).
    item = jnp.dtype(mxu_dtype).itemsize
    vmem_limit_bytes = 32 * 1024 * 1024
    per_step_bytes = (2 * 2 * Cp * lanes * 4             # x/out blocks, 2 buffers
                      + 2 * 2 * Cp * (9 * Cp + 8) * item  # w1/w2
                      + 2 * 9 * lanes * item              # masks
                      + (9 * Cp + 8) * lanes * item       # tap scratch
                      + 6 * Cp * lanes * 4)               # live f32 headroom
    if per_step_bytes > (3 * vmem_limit_bytes) // 4:
        # TODO(synk): add H-row tiling (2-row halo) instead of erroring here.
        raise ValueError("BasicBlock block does not fit VMEM; lower "
                         "images_per_step or add H-row (halo) tiling.")

    out_lanes = pl.pallas_call(
        _make_kernel(Cp, W, lanes, mxu_dtype),
        out_shape=jax.ShapeDtypeStruct((Cp, N * HW), jnp.float32),
        grid=(num_groups,),
        in_specs=[
            pl.BlockSpec((Cp, lanes), lambda g: (0, g)),        # x (per group)
            pl.BlockSpec((Cp, 9 * Cp + 8), lambda g: (0, 0)),   # w1 (+bias col)
            pl.BlockSpec((Cp, 9 * Cp + 8), lambda g: (0, 0)),   # w2 (+bias col)
            pl.BlockSpec((9, lanes), lambda g: (0, 0)),         # border masks
        ],
        out_specs=pl.BlockSpec((Cp, lanes), lambda g: (0, g)),
        scratch_shapes=[pltpu.VMEM((9 * Cp + 8, lanes), mxu_dtype)],
        compiler_params=pltpu.CompilerParams(
            dimension_semantics=("parallel",),   # groups shard over v7x's 2 TCs
            vmem_limit_bytes=vmem_limit_bytes,
        ),
    )(x_lanes, w1p, w2p, masks)

    return (out_lanes.reshape(Cp, N, HW)
            .transpose(1, 0, 2)[:, :C, :]
            .reshape(N, C, H, W))


def _reference_forward(x, w1, b1, w2, b2):
    """Pure-JAX reference (lax.conv, NCHW/OIHW) for correctness checking."""
    dn = ("NCHW", "OIHW", "NCHW")

    def conv(h, w, b):
        y = jax.lax.conv_general_dilated(h, w, (1, 1), "SAME",
                                         dimension_numbers=dn)
        return y + b[None, :, None, None]

    h = jax.nn.relu(x)
    h = conv(h, w1, b1)
    h = jax.nn.relu(h)
    h = conv(h, w2, b2)
    return h + x


def _xavier_uniform(key, c):
    # PyTorch xavier_uniform_ on (C, C, 3, 3): fan_in = fan_out = C*9.
    fan = c * 9
    bound = math.sqrt(6.0 / (fan + fan))
    return jax.random.uniform(key, (c, c, 3, 3), jnp.float32, -bound, bound)


if __name__ == "__main__":
    N, C, H, W = 2, 4, 16, 16   # BasicBlock(n_channels=4) on a 16x16 feature map

    key = jax.random.PRNGKey(0)
    kx, k1, k2, kb1, kb2 = jax.random.split(key, 5)
    x = jax.random.normal(kx, (N, C, H, W), jnp.float32)
    w1 = _xavier_uniform(k1, C)
    w2 = _xavier_uniform(k2, C)
    # Module init zeroes the biases; use small nonzero biases here to also
    # exercise the bias-fold path in the kernel (forward accepts any bias).
    b1 = 0.1 * jax.random.normal(kb1, (C,), jnp.float32)
    b2 = 0.1 * jax.random.normal(kb2, (C,), jnp.float32)

    out = jax.block_until_ready(jax.jit(basic_block_forward)(x, w1, b1, w2, b2))
    ref = _reference_forward(x, w1, b1, w2, b2)

    assert out.shape == (N, C, H, W)
    assert jnp.allclose(out, ref, atol=1e-4, rtol=1e-4), \
        float(jnp.max(jnp.abs(out - ref)))
    print("KERNEL_OK")
</pallas_src>

<mosaic_0001>
module attributes {stable_mosaic.version = 11 : i64} {
  func.func @kernel(%arg0: i32, %arg1: memref<8x256xf32, #tpu.memory_space<vmem>>, %arg2: memref<8x80xf32, #tpu.memory_space<vmem>>, %arg3: memref<8x80xf32, #tpu.memory_space<vmem>>, %arg4: memref<9x256xf32, #tpu.memory_space<vmem>>, %arg5: memref<8x256xf32, #tpu.memory_space<vmem>>, %arg6: memref<80x256xf32, #tpu.memory_space<vmem>>) attributes {dimension_semantics = [#tpu.dimension_semantics<parallel>], iteration_bounds = array<i64: 2>, scalar_prefetch = 0 : i64, scratch_operands = 1 : i64, tpu.core_type = #tpu.core_type<tc>, window_params = [{transform_indices = @transform_0, window_bounds = array<i64: 8, 256>}, {pipeline_mode = #tpu.pipeline_mode<synchronous>, transform_indices = @transform_1, window_bounds = array<i64: 8, 80>}, {pipeline_mode = #tpu.pipeline_mode<synchronous>, transform_indices = @transform_2, window_bounds = array<i64: 8, 80>}, {pipeline_mode = #tpu.pipeline_mode<synchronous>, transform_indices = @transform_3, window_bounds = array<i64: 9, 256>}, {transform_indices = @transform_4, window_bounds = array<i64: 8, 256>}]} {
    %c0 = arith.constant 0 : index
    %c0_0 = arith.constant 0 : index
    %0 = vector.load %arg1[%c0, %c0_0] : memref<8x256xf32, #tpu.memory_space<vmem>>, vector<8x256xf32>
    %1 = tpu.iota {dimensions = array<i32: 0>} : vector<8x256xi32>
    %c0_i32 = arith.constant 0 : i32
    %2 = vector.broadcast %c0_i32 : i32 to vector<8x256xi32>
    %3 = arith.cmpi eq, %1, %2 : vector<8x256xi32>
    %4 = arith.extui %3 : vector<8x256xi1> to vector<8x256xi32>
    %5 = arith.sitofp %4 : vector<8x256xi32> to vector<8x256xf32>
    %c72 = arith.constant 72 : index
    %c0_1 = arith.constant 0 : index
    %6 = vector.load %arg6[%c72, %c0_1] : memref<80x256xf32, #tpu.memory_space<vmem>>, vector<8x256xf32>
    tpu.vector_store %arg6[%c72, %c0_1], %5 {strides = array<i32>} : memref<80x256xf32, #tpu.memory_space<vmem>>, vector<8x256xf32>,
    %cst = arith.constant 0.000000e+00 : f32
    %7 = vector.broadcast %cst : f32 to vector<8x256xf32>
    %8 = arith.maximumf %0, %7 : vector<8x256xf32>
    %c17_i32 = arith.constant 17 : i32
    %9 = tpu.dynamic_rotate %8 by %c17_i32 dim 1 : vector<8x256xf32>, i32 -> vector<8x256xf32>
    %c0_2 = arith.constant 0 : index
    %c0_3 = arith.constant 0 : index
    %10 = vector.load %arg4[%c0_2, %c0_3] : memref<9x256xf32, #tpu.memory_space<vmem>>, vector<1x256xf32>
    %11 = vector.broadcast %10 : vector<1x256xf32> to vector<8x256xf32>
    %12 = arith.mulf %9, %11 : vector<8x256xf32>
    %c0_4 = arith.constant 0 : index
    %c0_5 = arith.constant 0 : index
    %13 = vector.load %arg6[%c0_4, %c0_5] : memref<80x256xf32, #tpu.memory_space<vmem>>, vector<8x256xf32>
    tpu.vector_store %arg6[%c0_4, %c0_5], %12 {strides = array<i32>} : memref<80x256xf32, #tpu.memory_space<vmem>>, vector<8x256xf32>,
    %c16_i32 = arith.constant 16 : i32
    %14 = tpu.dynamic_rotate %8 by %c16_i32 dim 1 : vector<8x256xf32>, i32 -> vector<8x256xf32>
    %c1 = arith.constant 1 : index
    %c0_6 = arith.constant 0 : index
    %15 = vector.load %arg4[%c1, %c0_6] : memref<9x256xf32, #tpu.memory_space<vmem>>, vector<1x256xf32>
    %16 = vector.broadcast %15 : vector<1x256xf32> to vector<8x256xf32>
    %17 = arith.mulf %14, %16 : vector<8x256xf32>
    %c8 = arith.constant 8 : index
    %c0_7 = arith.constant 0 : index
    %18 = vector.load %arg6[%c8, %c0_7] : memref<80x256xf32, #tpu.memory_space<vmem>>, vector<8x256xf32>
    tpu.vector_store %arg6[%c8, %c0_7], %17 {strides = array<i32>} : memref<80x256xf32, #tpu.memory_space<vmem>>, vector<8x256xf32>,
    %c15_i32 = arith.constant 15 : i32
    %19 = tpu.dynamic_rotate %8 by %c15_i32 dim 1 : vector<8x256xf32>, i32 -> vector<8x256xf32>
    %c2 = arith.constant 2 : index
    %c0_8 = arith.constant 0 : index
    %20 = vector.load %arg4[%c2, %c0_8] : memref<9x256xf32, #tpu.memory_space<vmem>>, vector<1x256xf32>
    %21 = vector.broadcast %20 : vector<1x256xf32> to vector<8x256xf32>
    %22 = arith.mulf %19, %21 : vector<8x256xf32>
    %c16 = arith.constant 16 : index
    %c0_9 = arith.constant 0 : index
    %23 = vector.load %arg6[%c16, %c0_9] : memref<80x256xf32, #tpu.memory_space<vmem>>, vector<8x256xf32>
    tpu.vector_store %arg6[%c16, %c0_9], %22 {strides = array<i32>} : memref<80x256xf32, #tpu.memory_space<vmem>>, vector<8x256xf32>,
    %c1_i32 = arith.constant 1 : i32
    %24 = tpu.dynamic_rotate %8 by %c1_i32 dim 1 : vector<8x256xf32>, i32 -> vector<8x256xf32>
    %c3 = arith.constant 3 : index
    %c0_10 = arith.constant 0 : index
    %25 = vector.load %arg4[%c3, %c0_10] : memref<9x256xf32, #tpu.memory_space<vmem>>, vector<1x256xf32>
    %26 = vector.broadcast %25 : vector<1x256xf32> to vector<8x256xf32>
    %27 = arith.mulf %24, %26 : vector<8x256xf32>
    %c24 = arith.constant 24 : index
    %c0_11 = arith.constant 0 : index
    %28 = vector.load %arg6[%c24, %c0_11] : memref<80x256xf32, #tpu.memory_space<vmem>>, vector<8x256xf32>
    tpu.vector_store %arg6[%c24, %c0_11], %27 {strides = array<i32>} : memref<80x256xf32, #tpu.memory_space<vmem>>, vector<8x256xf32>,
    %c32 = arith.constant 32 : index
    %c0_12 = arith.constant 0 : index
    %29 = vector.load %arg6[%c32, %c0_12] : memref<80x256xf32, #tpu.memory_space<vmem>>, vector<8x256xf32>
    tpu.vector_store %arg6[%c32, %c0_12], %8 {strides = array<i32>} : memref<80x256xf32, #tpu.memory_space<vmem>>, vector<8x256xf32>,
    %c255_i32 = arith.constant 255 : i32
    %30 = tpu.dynamic_rotate %8 by %c255_i32 dim 1 : vector<8x256xf32>, i32 -> vector<8x256xf32>
    %c5 = arith.constant 5 : index
    %c0_13 = arith.constant 0 : index
    %31 = vector.load %arg4[%c5, %c0_13] : memref<9x256xf32, #tpu.memory_space<vmem>>, vector<1x256xf32>
    %32 = vector.broadcast %31 : vector<1x256xf32> to vector<8x256xf32>
    %33 = arith.mulf %30, %32 : vector<8x256xf32>
    %c40 = arith.constant 40 : index
    %c0_14 = arith.constant 0 : index
    %34 = vector.load %arg6[%c40, %c0_14] : memref<80x256xf32, #tpu.memory_space<vmem>>, vector<8x256xf32>
    tpu.vector_store %arg6[%c40, %c0_14], %33 {strides = array<i32>} : memref<80x256xf32, #tpu.memory_space<vmem>>, vector<8x256xf32>,
    %c241_i32 = arith.constant 241 : i32
    %35 = tpu.dynamic_rotate %8 by %c241_i32 dim 1 : vector<8x256xf32>, i32 -> vector<8x256xf32>
    %c6 = arith.constant 6 : index
    %c0_15 = arith.constant 0 : index
    %36 = vector.load %arg4[%c6, %c0_15] : memref<9x256xf32, #tpu.memory_space<vmem>>, vector<1x256xf32>
    %37 = vector.broadcast %36 : vector<1x256xf32> to vector<8x256xf32>
    %38 = arith.mulf %35, %37 : vector<8x256xf32>
    %c48 = arith.constant 48 : index
    %c0_16 = arith.constant 0 : index
    %39 = vector.load %arg6[%c48, %c0_16] : memref<80x256xf32, #tpu.memory_space<vmem>>, vector<8x256xf32>
    tpu.vector_store %arg6[%c48, %c0_16], %38 {strides = array<i32>} : memref<80x256xf32, #tpu.memory_space<vmem>>, vector<8x256xf32>,
    %c240_i32 = arith.constant 240 : i32
    %40 = tpu.dynamic_rotate %8 by %c240_i32 dim 1 : vector<8x256xf32>, i32 -> vector<8x256xf32>
    %c7 = arith.constant 7 : index
    %c0_17 = arith.constant 0 : index
    %41 = vector.load %arg4[%c7, %c0_17] : memref<9x256xf32, #tpu.memory_space<vmem>>, vector<1x256xf32>
    %42 = vector.broadcast %41 : vector<1x256xf32> to vector<8x256xf32>
    %43 = arith.mulf %40, %42 : vector<8x256xf32>
    %c56 = arith.constant 56 : index
    %c0_18 = arith.constant 0 : index
    %44 = vector.load %arg6[%c56, %c0_18] : memref<80x256xf32, #tpu.memory_space<vmem>>, vector<8x256xf32>
    tpu.vector_store %arg6[%c56, %c0_18], %43 {strides = array<i32>} : memref<80x256xf32, #tpu.memory_space<vmem>>, vector<8x256xf32>,
    %c239_i32 = arith.constant 239 : i32
    %45 = tpu.dynamic_rotate %8 by %c239_i32 dim 1 : vector<8x256xf32>, i32 -> vector<8x256xf32>
    %c8_19 = arith.constant 8 : index
    %c0_20 = arith.constant 0 : index
    %46 = vector.load %arg4[%c8_19, %c0_20] : memref<9x256xf32, #tpu.memory_space<vmem>>, vector<1x256xf32>
    %47 = vector.broadcast %46 : vector<1x256xf32> to vector<8x256xf32>
    %48 = arith.mulf %45, %47 : vector<8x256xf32>
    %c64 = arith.constant 64 : index
    %c0_21 = arith.constant 0 : index
    %49 = vector.load %arg6[%c64, %c0_21] : memref<80x256xf32, #tpu.memory_space<vmem>>, vector<8x256xf32>
    tpu.vector_store %arg6[%c64, %c0_21], %48 {strides = array<i32>} : memref<80x256xf32, #tpu.memory_space<vmem>>, vector<8x256xf32>,
    %c0_22 = arith.constant 0 : index
    %c0_23 = arith.constant 0 : index
    %50 = vector.load %arg2[%c0_22, %c0_23] : memref<8x80xf32, #tpu.memory_space<vmem>>, vector<8x80xf32>
    %c0_24 = arith.constant 0 : index
    %c0_25 = arith.constant 0 : index
    %51 = vector.load %arg6[%c0_24, %c0_25] : memref<80x256xf32, #tpu.memory_space<vmem>>, vector<80x256xf32>
    %cst_26 = arith.constant dense<0.000000e+00> : vector<8x256xf32>
    %52 = tpu.matmul %50, %51, %cst_26 {dimension_numbers = #tpu.dot_dimension_numbers<[1], [0], [0], [1], [0, 0, 1, 1], [], []>} : vector<8x80xf32>, vector<80x256xf32>, vector<8x256xf32> -> vector<8x256xf32>
    %cst_27 = arith.constant 0.000000e+00 : f32
    %53 = vector.broadcast %cst_27 : f32 to vector<8x256xf32>
    %54 = arith.maximumf %52, %53 : vector<8x256xf32>
    %c17_i32_28 = arith.constant 17 : i32
    %55 = tpu.dynamic_rotate %54 by %c17_i32_28 dim 1 : vector<8x256xf32>, i32 -> vector<8x256xf32>
    %c0_29 = arith.constant 0 : index
    %c0_30 = arith.constant 0 : index
    %56 = vector.load %arg4[%c0_29, %c0_30] : memref<9x256xf32, #tpu.memory_space<vmem>>, vector<1x256xf32>
    %57 = vector.broadcast %56 : vector<1x256xf32> to vector<8x256xf32>
    %58 = arith.mulf %55, %57 : vector<8x256xf32>
    %c0_31 = arith.constant 0 : index
    %c0_32 = arith.constant 0 : index
    %59 = vector.load %arg6[%c0_31, %c0_32] : memref<80x256xf32, #tpu.memory_space<vmem>>, vector<8x256xf32>
    tpu.vector_store %arg6[%c0_31, %c0_32], %58 {strides = array<i32>} : memref<80x256xf32, #tpu.memory_space<vmem>>, vector<8x256xf32>,
    %c16_i32_33 = arith.constant 16 : i32
    %60 = tpu.dynamic_rotate %54 by %c16_i32_33 dim 1 : vector<8x256xf32>, i32 -> vector<8x256xf32>
    %c1_34 = arith.constant 1 : index
    %c0_35 = arith.constant 0 : index
    %61 = vector.load %arg4[%c1_34, %c0_35] : memref<9x256xf32, #tpu.memory_space<vmem>>, vector<1x256xf32>
    %62 = vector.broadcast %61 : vector<1x256xf32> to vector<8x256xf32>
    %63 = arith.mulf %60, %62 : vector<8x256xf32>
    %c8_36 = arith.constant 8 : index
    %c0_37 = arith.constant 0 : index
    %64 = vector.load %arg6[%c8_36, %c0_37] : memref<80x256xf32, #tpu.memory_space<vmem>>, vector<8x256xf32>
    tpu.vector_store %arg6[%c8_36, %c0_37], %63 {strides = array<i32>} : memref<80x256xf32, #tpu.memory_space<vmem>>, vector<8x256xf32>,
    %c15_i32_38 = arith.constant 15 : i32
    %65 = tpu.dynamic_rotate %54 by %c15_i32_38 dim 1 : vector<8x256xf32>, i32 -> vector<8x256xf32>
    %c2_39 = arith.constant 2 : index
    %c0_40 = arith.constant 0 : index
    %66 = vector.load %arg4[%c2_39, %c0_40] : memref<9x256xf32, #tpu.memory_space<vmem>>, vector<1x256xf32>
    %67 = vector.broadcast %66 : vector<1x256xf32> to vector<8x256xf32>
    %68 = arith.mulf %65, %67 : vector<8x256xf32>
    %c16_41 = arith.constant 16 : index
    %c0_42 = arith.constant 0 : index
    %69 = vector.load %arg6[%c16_41, %c0_42] : memref<80x256xf32, #tpu.memory_space<vmem>>, vector<8x256xf32>
    tpu.vector_store %arg6[%c16_41, %c0_42], %68 {strides = array<i32>} : memref<80x256xf32, #tpu.memory_space<vmem>>, vector<8x256xf32>,
    %c1_i32_43 = arith.constant 1 : i32
    %70 = tpu.dynamic_rotate %54 by %c1_i32_43 dim 1 : vector<8x256xf32>, i32 -> vector<8x256xf32>
    %c3_44 = arith.constant 3 : index
    %c0_45 = arith.constant 0 : index
    %71 = vector.load %arg4[%c3_44, %c0_45] : memref<9x256xf32, #tpu.memory_space<vmem>>, vector<1x256xf32>
    %72 = vector.broadcast %71 : vector<1x256xf32> to vector<8x256xf32>
    %73 = arith.mulf %70, %72 : vector<8x256xf32>
    %c24_46 = arith.constant 24 : index
    %c0_47 = arith.constant 0 : index
    %74 = vector.load %arg6[%c24_46, %c0_47] : memref<80x256xf32, #tpu.memory_space<vmem>>, vector<8x256xf32>
    tpu.vector_store %arg6[%c24_46, %c0_47], %73 {strides = array<i32>} : memref<80x256xf32, #tpu.memory_space<vmem>>, vector<8x256xf32>,
    %c32_48 = arith.constant 32 : index
    %c0_49 = arith.constant 0 : index
    %75 = vector.load %arg6[%c32_48, %c0_49] : memref<80x256xf32, #tpu.memory_space<vmem>>, vector<8x256xf32>
    tpu.vector_store %arg6[%c32_48, %c0_49], %54 {strides = array<i32>} : memref<80x256xf32, #tpu.memory_space<vmem>>, vector<8x256xf32>,
    %c255_i32_50 = arith.constant 255 : i32
    %76 = tpu.dynamic_rotate %54 by %c255_i32_50 dim 1 : vector<8x256xf32>, i32 -> vector<8x256xf32>
    %c5_51 = arith.constant 5 : index
    %c0_52 = arith.constant 0 : index
    %77 = vector.load %arg4[%c5_51, %c0_52] : memref<9x256xf32, #tpu.memory_space<vmem>>, vector<1x256xf32>
    %78 = vector.broadcast %77 : vector<1x256xf32> to vector<8x256xf32>
    %79 = arith.mulf %76, %78 : vector<8x256xf32>
    %c40_53 = arith.constant 40 : index
    %c0_54 = arith.constant 0 : index
    %80 = vector.load %arg6[%c40_53, %c0_54] : memref<80x256xf32, #tpu.memory_space<vmem>>, vector<8x256xf32>
    tpu.vector_store %arg6[%c40_53, %c0_54], %79 {strides = array<i32>} : memref<80x256xf32, #tpu.memory_space<vmem>>, vector<8x256xf32>,
    %c241_i32_55 = arith.constant 241 : i32
    %81 = tpu.dynamic_rotate %54 by %c241_i32_55 dim 1 : vector<8x256xf32>, i32 -> vector<8x256xf32>
    %c6_56 = arith.constant 6 : index
    %c0_57 = arith.constant 0 : index
    %82 = vector.load %arg4[%c6_56, %c0_57] : memref<9x256xf32, #tpu.memory_space<vmem>>, vector<1x256xf32>
    %83 = vector.broadcast %82 : vector<1x256xf32> to vector<8x256xf32>
    %84 = arith.mulf %81, %83 : vector<8x256xf32>
    %c48_58 = arith.constant 48 : index
    %c0_59 = arith.constant 0 : index
    %85 = vector.load %arg6[%c48_58, %c0_59] : memref<80x256xf32, #tpu.memory_space<vmem>>, vector<8x256xf32>
    tpu.vector_store %arg6[%c48_58, %c0_59], %84 {strides = array<i32>} : memref<80x256xf32, #tpu.memory_space<vmem>>, vector<8x256xf32>,
    %c240_i32_60 = arith.constant 240 : i32
    %86 = tpu.dynamic_rotate %54 by %c240_i32_60 dim 1 : vector<8x256xf32>, i32 -> vector<8x256xf32>
    %c7_61 = arith.constant 7 : index
    %c0_62 = arith.constant 0 : index
    %87 = vector.load %arg4[%c7_61, %c0_62] : memref<9x256xf32, #tpu.memory_space<vmem>>, vector<1x256xf32>
    %88 = vector.broadcast %87 : vector<1x256xf32> to vector<8x256xf32>
    %89 = arith.mulf %86, %88 : vector<8x256xf32>
    %c56_63 = arith.constant 56 : index
    %c0_64 = arith.constant 0 : index
    %90 = vector.load %arg6[%c56_63, %c0_64] : memref<80x256xf32, #tpu.memory_space<vmem>>, vector<8x256xf32>
    tpu.vector_store %arg6[%c56_63, %c0_64], %89 {strides = array<i32>} : memref<80x256xf32, #tpu.memory_space<vmem>>, vector<8x256xf32>,
    %c239_i32_65 = arith.constant 239 : i32
    %91 = tpu.dynamic_rotate %54 by %c239_i32_65 dim 1 : vector<8x256xf32>, i32 -> vector<8x256xf32>
    %c8_66 = arith.constant 8 : index
    %c0_67 = arith.constant 0 : index
    %92 = vector.load %arg4[%c8_66, %c0_67] : memref<9x256xf32, #tpu.memory_space<vmem>>, vector<1x256xf32>
    %93 = vector.broadcast %92 : vector<1x256xf32> to vector<8x256xf32>
    %94 = arith.mulf %91, %93 : vector<8x256xf32>
    %c64_68 = arith.constant 64 : index
    %c0_69 = arith.constant 0 : index
    %95 = vector.load %arg6[%c64_68, %c0_69] : memref<80x256xf32, #tpu.memory_space<vmem>>, vector<8x256xf32>
    tpu.vector_store %arg6[%c64_68, %c0_69], %94 {strides = array<i32>} : memref<80x256xf32, #tpu.memory_space<vmem>>, vector<8x256xf32>,
    %c0_70 = arith.constant 0 : index
    %c0_71 = arith.constant 0 : index
    %96 = vector.load %arg3[%c0_70, %c0_71] : memref<8x80xf32, #tpu.memory_space<vmem>>, vector<8x80xf32>
    %c0_72 = arith.constant 0 : index
    %c0_73 = arith.constant 0 : index
    %97 = vector.load %arg6[%c0_72, %c0_73] : memref<80x256xf32, #tpu.memory_space<vmem>>, vector<80x256xf32>
    %cst_74 = arith.constant dense<0.000000e+00> : vector<8x256xf32>
    %98 = tpu.matmul %96, %97, %cst_74 {dimension_numbers = #tpu.dot_dimension_numbers<[1], [0], [0], [1], [0, 0, 1, 1], [], []>} : vector<8x80xf32>, vector<80x256xf32>, vector<8x256xf32> -> vector<8x256xf32>
    %99 = arith.addf %98, %0 : vector<8x256xf32>
    %c0_75 = arith.constant 0 : index
    %c0_76 = arith.constant 0 : index
    %100 = vector.load %arg5[%c0_75, %c0_76] : memref<8x256xf32, #tpu.memory_space<vmem>>, vector<8x256xf32>
    tpu.vector_store %arg5[%c0_75, %c0_76], %99 {strides = array<i32>} : memref<8x256xf32, #tpu.memory_space<vmem>>, vector<8x256xf32>,
    return
  }
  func.func @transform_0(%arg0: i32) -> (i32, i32) {
    %c0_i32 = arith.constant 0 : i32
    %c0_i32_0 = arith.constant 0 : i32
    return %c0_i32, %arg0 : i32, i32
  }
  func.func @transform_1(%arg0: i32) -> (i32, i32) {
    %c0_i32 = arith.constant 0 : i32
    %c0_i32_0 = arith.constant 0 : i32
    %c0_i32_1 = arith.constant 0 : i32
    return %c0_i32, %c0_i32_0 : i32, i32
  }
  func.func @transform_2(%arg0: i32) -> (i32, i32) {
    %c0_i32 = arith.constant 0 : i32
    %c0_i32_0 = arith.constant 0 : i32
    %c0_i32_1 = arith.constant 0 : i32
    return %c0_i32, %c0_i32_0 : i32, i32
  }
  func.func @transform_3(%arg0: i32) -> (i32, i32) {
    %c0_i32 = arith.constant 0 : i32
    %c0_i32_0 = arith.constant 0 : i32
    %c0_i32_1 = arith.constant 0 : i32
    return %c0_i32, %c0_i32_0 : i32, i32
  }
  func.func @transform_4(%arg0: i32) -> (i32, i32) {
    %c0_i32 = arith.constant 0 : i32
    %c0_i32_0 = arith.constant 0 : i32
    return %c0_i32, %arg0 : i32, i32
  }
}

</mosaic_0001>

<llo_original>
// kernel: basic_block_forward.1
$region0: #{basic_block_forward.1}
  #allocation0 [shape = 'u32[]', space=smem, size = 0x4, offset = 0x4, fixed_abs, tag = 'smem constant byte address 0x4 - core index']
  #allocation1 [shape = 'u32[144,128]{1,0:T(1,128)}', space=vmem, size = 0x12000, scoped, tag = 'internal scratch']
  #allocation2 [shape = 'f32[80,256]{1,0:T(8,128)}', space=vmem, size = 0x14000, scoped, tag = 'scratch operand']
  %s0 = inlined_call_operand.vmem [shape: f32[8,512], index: 0, kind: input, shape index: {}]
  %s1 = inlined_call_operand.vmem [shape: f32[8,80], index: 1, kind: input, shape index: {}]
  %s2 = inlined_call_operand.vmem [shape: f32[8,80], index: 2, kind: input, shape index: {}]
  %s3 = inlined_call_operand.vmem [shape: f32[9,256], index: 3, kind: input, shape index: {}]
  %s4 = inlined_call_operand.vmem [shape: f32[8,512], index: 4, kind: output, shape index: {}]
  %s5 = sld [smem:[#allocation0]]
  $region49: #{basic_block_forward.1} parent=0
    _
  %s7 = ssub.s32 1, %s5
  %s8 = scalar_select 0, %s7, %s5
  loop: start=0, step=1, limit=4
  $region2: #{basic_block_forward.1} parent=0 // loop_pre_header
    _
  $region3: #{basic_block_forward.1} parent=0 // loop_header
    %s10 = sphi 0, %s14
    %p11 = scmp.ge.s32.totalorder %s10, 4
    %s20 = sphi 0, %s22
    %s23 = sphi 0, %s20
    %s24 = sphi 0, %s23
    %s40 = sphi 0, %s24
    %s44 = sphi 0, %s44
    %s46 = sphi 0, %s44
    %s47 = sphi 0, %s46
    %s61 = sphi 0, %s47
    %s65 = sphi 0, %s65
    %s67 = sphi 0, %s65
    %s68 = sphi 0, %s67
    %s82 = sphi 0, %s68
    %s86 = sphi 0, %s86
    %s88 = sphi 0, %s86
    %s89 = sphi 0, %s88
    %s103 = sphi 0, %s89
    %s109 = sphi 0, %s111
    %s112 = sphi 0, %s109
    %s113 = sphi 0, %s112
    %s129 = sphi 0, %s113
  $region4: #{basic_block_forward.1} parent=0 // loop_header_branch
    %13 = sbr.rel (%p11) target = $region8
  $region5: #{basic_block_forward.1} parent=0 // loop_body
    %s15 = ssub.s32 %s10, 1
    %s16 = ssub.s32 %s10, 2
    %s17 = sadd.s32 %s10, 1
    %s18 = ssub.s32 %s10, %s17
    %p19 = scmp.eq.s32.totalorder %s18, 0
    %s21 = sadd.s32 %s20, 1
    %s22 = scalar_select %p19, %s20, %s21
    %p25 = pneg %p19
    %p26 = scmp.eq.s32.totalorder %s10, 1
    %p27 = por %p25, %p26
    %p28 = scmp.ne.s32.totalorder %s20, %s23
    %p29 = scmp.eq.s32.totalorder %s10, 0
    %p30 = por %p28, %p29
    %p31 = scmp.ne.s32.totalorder %s20, %s23
    %p32 = scmp.eq.s32.totalorder %s15, 1
    %p33 = por %p31, %p32
    %p34 = scmp.ne.s32.totalorder %s23, %s24
    %p35 = scmp.eq.s32.totalorder %s15, 0
    %p36 = por %p34, %p35
    %p37 = scmp.ne.s32.totalorder %s23, %s24
    %p38 = scmp.eq.s32.totalorder %s16, 1
    %p39 = por %p37, %p38
    %p41 = scmp.ne.s32.totalorder %s24, %s40
    %p42 = scmp.eq.s32.totalorder %s16, 0
    %p43 = por %p41, %p42
    %s45 = sadd.s32 %s44, 1
    %p48 = scmp.eq.s32.totalorder %s10, 1
    %p49 = scmp.ne.s32.totalorder %s44, %s46
    %p50 = scmp.eq.s32.totalorder %s10, 0
    %p51 = por %p49, %p50
    %p52 = scmp.ne.s32.totalorder %s44, %s46
    %p53 = scmp.eq.s32.totalorder %s15, 1
    %p54 = por %p52, %p53
    %p55 = scmp.ne.s32.totalorder %s46, %s47
    %p56 = scmp.eq.s32.totalorder %s15, 0
    %p57 = por %p55, %p56
    %p58 = scmp.ne.s32.totalorder %s46, %s47
    %p59 = scmp.eq.s32.totalorder %s16, 1
    %p60 = por %p58, %p59
    %p62 = scmp.ne.s32.totalorder %s47, %s61
    %p63 = scmp.eq.s32.totalorder %s16, 0
    %p64 = por %p62, %p63
    %s66 = sadd.s32 %s65, 1
    %p69 = scmp.eq.s32.totalorder %s10, 1
    %p70 = scmp.ne.s32.totalorder %s65, %s67
    %p71 = scmp.eq.s32.totalorder %s10, 0
    %p72 = por %p70, %p71
    %p73 = scmp.ne.s32.totalorder %s65, %s67
    %p74 = scmp.eq.s32.totalorder %s15, 1
    %p75 = por %p73, %p74
    %p76 = scmp.ne.s32.totalorder %s67, %s68
    %p77 = scmp.eq.s32.totalorder %s15, 0
    %p78 = por %p76, %p77
    %p79 = scmp.ne.s32.totalorder %s67, %s68
    %p80 = scmp.eq.s32.totalorder %s16, 1
    %p81 = por %p79, %p80
    %p83 = scmp.ne.s32.totalorder %s68, %s82
    %p84 = scmp.eq.s32.totalorder %s16, 0
    %p85 = por %p83, %p84
    %s87 = sadd.s32 %s86, 1
    %p90 = scmp.eq.s32.totalorder %s10, 1
    %p91 = scmp.ne.s32.totalorder %s86, %s88
    %p92 = scmp.eq.s32.totalorder %s10, 0
    %p93 = por %p91, %p92
    %p94 = scmp.ne.s32.totalorder %s86, %s88
    %p95 = scmp.eq.s32.totalorder %s15, 1
    %p96 = por %p94, %p95
    %p97 = scmp.ne.s32.totalorder %s88, %s89
    %p98 = scmp.eq.s32.totalorder %s15, 0
    %p99 = por %p97, %p98
    %p100 = scmp.ne.s32.totalorder %s88, %s89
    %p101 = scmp.eq.s32.totalorder %s16, 1
    %p102 = por %p100, %p101
    %p104 = scmp.ne.s32.totalorder %s89, %s103
    %p105 = scmp.eq.s32.totalorder %s16, 0
    %p106 = por %p104, %p105
    %s107 = ssub.s32 %s10, %s17
    %p108 = scmp.eq.s32.totalorder %s107, 0
    %s110 = sadd.s32 %s109, 1
    %s111 = scalar_select %p108, %s109, %s110
    %p114 = pneg %p108
    %p115 = scmp.eq.s32.totalorder %s10, 1
    %p116 = por %p114, %p115
    %p117 = scmp.ne.s32.totalorder %s109, %s112
    %p118 = scmp.eq.s32.totalorder %s10, 0
    %p119 = por %p117, %p118
    %p120 = scmp.ne.s32.totalorder %s109, %s112
    %p121 = scmp.eq.s32.totalorder %s15, 1
    %p122 = por %p120, %p121
    %p123 = scmp.ne.s32.totalorder %s112, %s113
    %p124 = scmp.eq.s32.totalorder %s15, 0
    %p125 = por %p123, %p124
    %p126 = scmp.ne.s32.totalorder %s112, %s113
    %p127 = scmp.eq.s32.totalorder %s16, 1
    %p128 = por %p126, %p127
    %p130 = scmp.ne.s32.totalorder %s113, %s129
    %p131 = scmp.eq.s32.totalorder %s16, 0
    %p132 = por %p130, %p131
    %p133 = scmp.le.s32.totalorder 1, %s10
    %p134 = scmp.lt.s32.totalorder %s10, 3
    %p135 = pnand %p133, %p134
    %p136 = pneg %p135
    // Predicated region
    $region9: #{basic_block_forward.1} parent=5 // pred_check
      _
    $region10: #{basic_block_forward.1} parent=5 // pred_check_branch
      %138 = sbr.rel (%p135) target = $region12
    $region11: #{basic_block_forward.1} parent=5 // pred_region
      %s139 = ssub.s32 %s10, 1
      // Predicated region
      $region13: #{basic_block_forward.1} parent=11 // pred_check
        %p140 = pneg %p57
      $region14: #{basic_block_forward.1} parent=11 // pred_check_branch
        %142 = sbr.rel (%p140) target = $region16
      $region15: #{basic_block_forward.1} parent=11 // pred_region
        _
      $region16: #{basic_block_forward.1} parent=11 // pred_fallthru
        _
      // Predicated region
      $region17: #{basic_block_forward.1} parent=11 // pred_check
        %p143 = pneg %p78
      $region18: #{basic_block_forward.1} parent=11 // pred_check_branch
        %145 = sbr.rel (%p143) target = $region20
      $region19: #{basic_block_forward.1} parent=11 // pred_region
        _
      $region20: #{basic_block_forward.1} parent=11 // pred_fallthru
        _
      // Predicated region
      $region21: #{basic_block_forward.1} parent=11 // pred_check
        %p146 = pneg %p99
      $region22: #{basic_block_forward.1} parent=11 // pred_check_branch
        %148 = sbr.rel (%p146) target = $region24
      $region23: #{basic_block_forward.1} parent=11 // pred_region
        _
      $region24: #{basic_block_forward.1} parent=11 // pred_fallthru
        _
    $region12: #{basic_block_forward.1} parent=5 // pred_fallthru
      _
    %p149 = scmp.lt.s32.totalorder %s10, 2
    // Predicated region
    $region25: #{basic_block_forward.1} parent=5 // pred_check
      %p150 = pneg %p149
    $region26: #{basic_block_forward.1} parent=5 // pred_check_branch
      %152 = sbr.rel (%p150) target = $region28
    $region27: #{basic_block_forward.1} parent=5 // pred_region
      // Predicated region
      $region29: #{basic_block_forward.1} parent=27 // pred_check
        %p153 = pneg %p30
      $region30: #{basic_block_forward.1} parent=27 // pred_check_branch
        %155 = sbr.rel (%p153) target = $region32
      $region31: #{basic_block_forward.1} parent=27 // pred_region
        %s156 = smul.u32 2, %s10
        %p157 = scmp.lt.s32.totalorder %s156, 3
        %s158 = scalar_select %p157, %s156, 3
        %s159 = smul.addr %s158, 8
        %s160 = scalar_lea.vmem %s0, %s159
        %s161 = smul.u32 2, %s10
      $region32: #{basic_block_forward.1} parent=27 // pred_fallthru
        _
    $region28: #{basic_block_forward.1} parent=5 // pred_fallthru
      _
    %p162 = scmp.le.s32.totalorder 1, %s10
    %p163 = scmp.lt.s32.totalorder %s10, 3
    %p164 = pnand %p162, %p163
    %p165 = pneg %p164
    // Predicated region
    $region33: #{basic_block_forward.1} parent=5 // pred_check
      _
    $region34: #{basic_block_forward.1} parent=5 // pred_check_branch
      %167 = sbr.rel (%p164) target = $region36
    $region35: #{basic_block_forward.1} parent=5 // pred_region
      %s168 = ssub.s32 %s10, 1
      %s169 = smul.u32 2, %s15
      %p170 = scmp.lt.s32.totalorder %s169, 3
      %s171 = scalar_select %p170, %s169, 3
      %s172 = smul.addr %s171, 8
      %s173 = scalar_lea.vmem %s0, %s172
      %p174 = pneg %p36
      %p175 = pneg %p33
      %p176 = pneg %p57
      %p177 = pneg %p54
      %p178 = pneg %p78
      %p179 = pneg %p75
      %p180 = pneg %p99
      %p181 = pneg %p96
      %p182 = pneg %p125
      %p183 = pneg %p122
      %s184 = smul.u32 2, %s15
      %p185 = scmp.lt.s32.totalorder %s184, 3
      %s186 = scalar_select %p185, %s184, 3
      %s187 = smul.addr %s186, 8
      %s188 = scalar_lea.vmem %s4, %s187
      %s189 = smul.u32 2, %s15
      %p190 = scmp.lt.s32.totalorder %s189, 3
      %s191 = scalar_select %p190, %s189, 3
      %s192 = smul.addr %s191, 8
      %s193 = scalar_lea.vmem %s0, %s192
      %s194 = smul.u32 2, %s15
      %s195 = smul.u32 2, %s15
      %p196 = scmp.lt.s32.totalorder %s195, 3
      %s197 = scalar_select %p196, %s195, 3
      %s198 = smul.addr %s197, 8
      %s199 = scalar_lea.vmem %s4, %s198
      %s200 = smul.u32 2, %s15
      %v201 = vld [vmem:[%s193] sm:$0xff]
      %v202 = vld [vmem:[%s193 + $0x8] sm:$0xff]
      %v203 = vlaneseq
      %v204 = vshrl.u32 %v203, 7
      %vm205 = vcmp.eq.s32.totalorder %v204, 0
      %v206 = vsel %vm205, 1, 0
      %v207 = vcvt.s32.f32 %v206
      %208 = vst [vmem:[#allocation2 + $0x90] sm:$0xff] %v207
      %209 = vst [vmem:[#allocation2 + $0x98] sm:$0xff] %v207
      %v210 = vmax.f32 %v201, 0.0
      %v211 = vmax.f32 %v202, 0.0
      %212 = vrot.lane.b32.xlu0 %v210, 17
      %v213 = vpop.permute.xlu0 %212
      %214 = vrot.lane.b32.xlu0 %v211, 17
      %v215 = vpop.permute.xlu0 %214
      %v216 = vlaneseq
      %v217 = vand.u32 %v216, 127
      %vm218 = vcmp.lt.s32.totalorder %v217, 17
      %v219 = vsel %vm218, %v213, %v215
      %v220 = vsel %vm218, %v215, %v213
      %v221 = vld [vmem:[%s3] ss:$8 sm:$0x3]
      %v223 = vlaneseq
      %v224 = vshrl.u32 %v223, 7
      %v225 = vsub.s32 0, %v224
      %v226 = vrot.slane %v221, %v225
      %v227 = vlaneseq
      %v228 = vshrl.u32 %v227, 7
      %v229 = vsub.s32 1, %v228
      %v230 = vrot.slane %v221, %v229
      %v233 = vmul.f32 %v220, %v226
      %v234 = vmul.f32 %v219, %v230
      %235 = vst [vmem:[#allocation2] sm:$0xff] %v233
      %236 = vst [vmem:[#allocation2 + $0x8] sm:$0xff] %v234
      %237 = vrot.lane.b32.xlu0 %v210, 16
      %v238 = vpop.permute.xlu0 %237
      %239 = vrot.lane.b32.xlu0 %v211, 16
      %v240 = vpop.permute.xlu0 %239
      %vm241 = vcmp.lt.s32.totalorder %v217, 16
      %v242 = vsel %vm241, %v238, %v240
      %v243 = vsel %vm241, %v240, %v238
      %s244 = scalar_lea.vmem %s3, 1
      %v245 = vld [vmem:[%s244] ss:$8 sm:$0x3]
      %v247 = vlaneseq
      %v248 = vshrl.u32 %v247, 7
      %v249 = vsub.s32 0, %v248
      %v250 = vrot.slane %v245, %v249
      %v251 = vlaneseq
      %v252 = vshrl.u32 %v251, 7
      %v253 = vsub.s32 1, %v252
      %v254 = vrot.slane %v245, %v253
      %v257 = vmul.f32 %v243, %v250
      %v258 = vmul.f32 %v242, %v254
      %259 = vst [vmem:[#allocation2 + $0x10] sm:$0xff] %v257
      %260 = vst [vmem:[#allocation2 + $0x18] sm:$0xff] %v258
      %261 = vrot.lane.b32.xlu0 %v210, 15
      %v262 = vpop.permute.xlu0 %261
      %263 = vrot.lane.b32.xlu0 %v211, 15
      %v264 = vpop.permute.xlu0 %263
      %vm265 = vcmp.lt.s32.totalorder %v217, 15
      %v266 = vsel %vm265, %v262, %v264
      %v267 = vsel %vm265, %v264, %v262
      %s268 = scalar_lea.vmem %s3, 2
      %v269 = vld [vmem:[%s268] ss:$8 sm:$0x3]
      %v271 = vlaneseq
      %v272 = vshrl.u32 %v271, 7
      %v273 = vsub.s32 0, %v272
      %v274 = vrot.slane %v269, %v273
      %v275 = vlaneseq
      %v276 = vshrl.u32 %v275, 7
      %v277 = vsub.s32 1, %v276
      %v278 = vrot.slane %v269, %v277
      %v281 = vmul.f32 %v267, %v274
      %v282 = vmul.f32 %v266, %v278
      %283 = vst [vmem:[#allocation2 + $0x20] sm:$0xff] %v281
      %284 = vst [vmem:[#allocation2 + $0x28] sm:$0xff] %v282
      %285 = vrot.lane.b32.xlu0 %v210, 1
      %v286 = vpop.permute.xlu0 %285
      %287 = vrot.lane.b32.xlu0 %v211, 1
      %v288 = vpop.permute.xlu0 %287
      %vm289 = vcmp.lt.s32.totalorder %v217, 1
      %v290 = vsel %vm289, %v286, %v288
      %v291 = vsel %vm289, %v288, %v286
      %s292 = scalar_lea.vmem %s3, 3
      %v293 = vld [vmem:[%s292] ss:$8 sm:$0x3]
      %v295 = vlaneseq
      %v296 = vshrl.u32 %v295, 7
      %v297 = vsub.s32 0, %v296
      %v298 = vrot.slane %v293, %v297
      %v299 = vlaneseq
      %v300 = vshrl.u32 %v299, 7
      %v301 = vsub.s32 1, %v300
      %v302 = vrot.slane %v293, %v301
      %v305 = vmul.f32 %v291, %v298
      %v306 = vmul.f32 %v290, %v302
      %307 = vst [vmem:[#allocation2 + $0x30] sm:$0xff] %v305
      %308 = vst [vmem:[#allocation2 + $0x38] sm:$0xff] %v306
      %309 = vst [vmem:[#allocation2 + $0x40] sm:$0xff] %v210
      %310 = vst [vmem:[#allocation2 + $0x48] sm:$0xff] %v211
      %311 = vrot.lane.b32.xlu0 %v210, 127
      %v312 = vpop.permute.xlu0 %311
      %313 = vrot.lane.b32.xlu0 %v211, 127
      %v314 = vpop.permute.xlu0 %313
      %vm315 = vcmp.lt.s32.totalorder %v217, 127
      %v316 = vsel %vm315, %v312, %v314
      %v317 = vsel %vm315, %v314, %v312
      %s318 = scalar_lea.vmem %s3, 5
      %v319 = vld [vmem:[%s318] ss:$8 sm:$0x3]
      %v321 = vlaneseq
      %v322 = vshrl.u32 %v321, 7
      %v323 = vsub.s32 0, %v322
      %v324 = vrot.slane %v319, %v323
      %v325 = vlaneseq
      %v326 = vshrl.u32 %v325, 7
      %v327 = vsub.s32 1, %v326
      %v328 = vrot.slane %v319, %v327
      %v331 = vmul.f32 %v316, %v324
      %v332 = vmul.f32 %v317, %v328
      %333 = vst [vmem:[#allocation2 + $0x50] sm:$0xff] %v331
      %334 = vst [vmem:[#allocation2 + $0x58] sm:$0xff] %v332
      %335 = vrot.lane.b32.xlu0 %v210, 113
      %v336 = vpop.permute.xlu0 %335
      %337 = vrot.lane.b32.xlu0 %v211, 113
      %v338 = vpop.permute.xlu0 %337
      %vm339 = vcmp.lt.s32.totalorder %v217, 113
      %v340 = vsel %vm339, %v336, %v338
      %v341 = vsel %vm339, %v338, %v336
      %s342 = scalar_lea.vmem %s3, 6
      %v343 = vld [vmem:[%s342] ss:$8 sm:$0x3]
      %v345 = vlaneseq
      %v346 = vshrl.u32 %v345, 7
      %v347 = vsub.s32 0, %v346
      %v348 = vrot.slane %v343, %v347
      %v349 = vlaneseq
      %v350 = vshrl.u32 %v349, 7
      %v351 = vsub.s32 1, %v350
      %v352 = vrot.slane %v343, %v351
      %v355 = vmul.f32 %v340, %v348
      %v356 = vmul.f32 %v341, %v352
      %357 = vst [vmem:[#allocation2 + $0x60] sm:$0xff] %v355
      %358 = vst [vmem:[#allocation2 + $0x68] sm:$0xff] %v356
      %359 = vrot.lane.b32.xlu0 %v210, 112
      %v360 = vpop.permute.xlu0 %359
      %361 = vrot.lane.b32.xlu0 %v211, 112
      %v362 = vpop.permute.xlu0 %361
      %vm363 = vcmp.lt.s32.totalorder %v217, 112
      %v364 = vsel %vm363, %v360, %v362
      %v365 = vsel %vm363, %v362, %v360
      %s366 = scalar_lea.vmem %s3, 7
      %v367 = vld [vmem:[%s366] ss:$8 sm:$0x3]
      %v369 = vlaneseq
      %v370 = vshrl.u32 %v369, 7
      %v371 = vsub.s32 0, %v370
      %v372 = vrot.slane %v367, %v371
      %v373 = vlaneseq
      %v374 = vshrl.u32 %v373, 7
      %v375 = vsub.s32 1, %v374
      %v376 = vrot.slane %v367, %v375
      %v379 = vmul.f32 %v364, %v372
      %v380 = vmul.f32 %v365, %v376
      %381 = vst [vmem:[#allocation2 + $0x70] sm:$0xff] %v379
      %382 = vst [vmem:[#allocation2 + $0x78] sm:$0xff] %v380
      %383 = vrot.lane.b32.xlu0 %v210, 111
      %v384 = vpop.permute.xlu0 %383
      %385 = vrot.lane.b32.xlu0 %v211, 111
      %v386 = vpop.permute.xlu0 %385
      %vm387 = vcmp.lt.s32.totalorder %v217, 111
      %v388 = vsel %vm387, %v384, %v386
      %v389 = vsel %vm387, %v386, %v384
      %s390 = scalar_lea.vmem %s3, 16
      %v391 = vld [vmem:[%s390] ss:$8 sm:$0x3]
      %v393 = vlaneseq
      %v394 = vshrl.u32 %v393, 7
      %v395 = vsub.s32 0, %v394
      %v396 = vrot.slane %v391, %v395
      %v397 = vlaneseq
      %v398 = vshrl.u32 %v397, 7
      %v399 = vsub.s32 1, %v398
      %v400 = vrot.slane %v391, %v399
      %v403 = vmul.f32 %v388, %v396
      %v404 = vmul.f32 %v389, %v400
      %405 = vst [vmem:[#allocation2 + $0x80] sm:$0xff] %v403
      %406 = vst [vmem:[#allocation2 + $0x88] sm:$0xff] %v404
      %v407 = vld [vmem:[%s1] sm:$0xff]
      %v408 = vld [vmem:[#allocation2] sm:$0xff]
      %v409 = vld [vmem:[#allocation2 + $0x8] sm:$0xff]
      %v410 = vld [vmem:[#allocation2 + $0x10] sm:$0xff]
      %v411 = vld [vmem:[#allocation2 + $0x18] sm:$0xff]
      %v412 = vld [vmem:[#allocation2 + $0x20] sm:$0xff]
      %v413 = vld [vmem:[#allocation2 + $0x28] sm:$0xff]
      %v414 = vld [vmem:[#allocation2 + $0x30] sm:$0xff]
      %v415 = vld [vmem:[#allocation2 + $0x38] sm:$0xff]
      %v416 = vld [vmem:[#allocation2 + $0x40] sm:$0xff]
      %v417 = vld [vmem:[#allocation2 + $0x48] sm:$0xff]
      %v418 = vld [vmem:[#allocation2 + $0x50] sm:$0xff]
      %v419 = vld [vmem:[#allocation2 + $0x58] sm:$0xff]
      %v420 = vld [vmem:[#allocation2 + $0x60] sm:$0xff]
      %v421 = vld [vmem:[#allocation2 + $0x68] sm:$0xff]
      %v422 = vld [vmem:[#allocation2 + $0x70] sm:$0xff]
      %v423 = vld [vmem:[#allocation2 + $0x78] sm:$0xff]
      %v424 = vld [vmem:[#allocation2 + $0x80] sm:$0xff]
      %v425 = vld [vmem:[#allocation2 + $0x88] sm:$0xff]
      %v426 = vld [vmem:[#allocation2 + $0x90] sm:$0xff]
      %v427 = vld [vmem:[#allocation2 + $0x98] sm:$0xff]
      %vm428 = vcmask 654336
      %v430 = vsel %vm428, %v407, 0
      %432 = vmatprep.subr.mxu0 %v409
      %433 = vmatpush1.msra.mxu0 %v408
      %434 = vmatprep.subr.mxu0 %v411
      %435 = vmatpush1.msra.mxu0 %v410
      %436 = vmatprep.subr.mxu0 %v413
      %437 = vmatpush1.msra.mxu0 %v412
      %438 = vmatprep.subr.mxu0 %v415
      %439 = vmatpush1.msra.mxu0 %v414
      %440 = vmatprep.subr.mxu0 %v417
      %441 = vmatpush1.msra.mxu0 %v416
      %442 = vmatprep.subr.mxu0 %v419
      %443 = vmatpush1.msra.mxu0 %v418
      %444 = vmatprep.subr.mxu0 %v421
      %445 = vmatpush1.msra.mxu0 %v420
      %446 = vmatprep.subr.mxu0 %v423
      %447 = vmatpush1.msra.mxu0 %v422
      %448 = vmatprep.subr.mxu0 %v425
      %449 = vmatpush1.msra.mxu0 %v424
      %450 = vmatprep.subr.mxu0 %v427
      %451 = vmatpush1.msra.mxu0 %v426
      %452 = vmatprep.subr.mxu0 0.0
      %453 = vmatpush1.msra.mxu0 0.0
      %454 = vmatprep.subr.mxu0 0.0
      %455 = vmatpush1.msra.mxu0 0.0
      %456 = vmatprep.subr.mxu0 0.0
      %457 = vmatpush1.msra.mxu0 0.0
      %458 = vmatprep.subr.mxu0 0.0
      %459 = vmatpush1.msra.mxu0 0.0
      %460 = vmatprep.subr.mxu0 0.0
      %461 = vmatpush1.msra.mxu0 0.0
      %462 = vmatprep.subr.mxu0 0.0
      %463 = vmatpush1.msra.mxu0 0.0
      %464 = vmatprep.subr.mxu0 0.0
      %465 = vmatpush1.msra.mxu0 0.0
      %466 = vmatprep.subr.mxu0 0.0
      %467 = vmatpush1.msra.mxu0 0.0
      %468 = vmatprep.subr.mxu0 0.0
      %469 = vmatpush1.msra.mxu0 0.0
      %470 = vmatprep.subr.mxu0 0.0
      %471 = vmatpush1.msra.mxu0 0.0
      %472 = vmatprep.subr.mxu0 0.0
      %473 = vmatpush1.msra.mxu0 0.0
      %474 = vmatprep.subr.mxu0 0.0
      %475 = vmatpush1.msra.mxu0 0.0
      %476 = vmatprep.subr.mxu0 0.0
      %477 = vmatpush1.msra.mxu0 0.0
      %478 = vmatprep.subr.mxu0 0.0
      %479 = vmatpush1.msra.mxu0 0.0
      %480 = vmatprep.subr.mxu0 0.0
      %481 = vmatpush1.msra.mxu0 0.0
      %482 = vmatprep.subr.mxu0 0.0
      %483 = vmatpush1.msra.mxu0 0.0
      %484 = vmatprep.subr.mxu0 0.0
      %485 = vmatpush1.msra.mxu0 0.0
      %486 = vmatprep.subr.mxu0 0.0
      %487 = vmatpush1.msra.mxu0 0.0
      %488 = vmatprep.subr.mxu0 0.0
      %489 = vmatpush1.msra.mxu0 0.0
      %490 = vmatprep.subr.mxu0 0.0
      %491 = vmatpush1.msra.mxu0 0.0
      %492 = vmatprep.subr.mxu0 0.0
      %493 = vmatpush1.msra.mxu0 0.0
      %494 = vmatprep.subr.mxu0 0.0
      %495 = vmatpush1.msra.mxu0 0.0
      %496 = vmatprep.mubr.f32.mxu0 0.0
      %497 = vmatmul.mubr.f32.gmra.mrb[0].mxu0 %v430
      %v498 = vpop.f32.mrb[0].mxu0
      %v499 = vadd.f32 0.0, %v498
      %v500 = vpop.f32.mrb[0].mxu0
      %v501 = vadd.f32 0.0, %v500
      %502 = vdwg.mxu0
      %v503 = vmax.f32 %v499, 0.0
      %v504 = vmax.f32 %v501, 0.0
      %505 = vrot.lane.b32.xlu0 %v503, 17
      %v506 = vpop.permute.xlu0 %505
      %507 = vrot.lane.b32.xlu0 %v504, 17
      %v508 = vpop.permute.xlu0 %507
      %v509 = vsel %vm218, %v506, %v508
      %v510 = vsel %vm218, %v508, %v506
      %v511 = vld [vmem:[%s3] ss:$8 sm:$0x3]
      %v513 = vlaneseq
      %v514 = vshrl.u32 %v513, 7
      %v515 = vsub.s32 0, %v514
      %v516 = vrot.slane %v511, %v515
      %v517 = vlaneseq
      %v518 = vshrl.u32 %v517, 7
      %v519 = vsub.s32 1, %v518
      %v520 = vrot.slane %v511, %v519
      %v523 = vmul.f32 %v510, %v516
      %v524 = vmul.f32 %v509, %v520
      %525 = vst [vmem:[#allocation2] sm:$0xff] %v523
      %526 = vst [vmem:[#allocation2 + $0x8] sm:$0xff] %v524
      %527 = vrot.lane.b32.xlu0 %v503, 16
      %v528 = vpop.permute.xlu0 %527
      %529 = vrot.lane.b32.xlu0 %v504, 16
      %v530 = vpop.permute.xlu0 %529
      %v531 = vsel %vm241, %v528, %v530
      %v532 = vsel %vm241, %v530, %v528
      %v533 = vld [vmem:[%s244] ss:$8 sm:$0x3]
      %v535 = vlaneseq
      %v536 = vshrl.u32 %v535, 7
      %v537 = vsub.s32 0, %v536
      %v538 = vrot.slane %v533, %v537
      %v539 = vlaneseq
      %v540 = vshrl.u32 %v539, 7
      %v541 = vsub.s32 1, %v540
      %v542 = vrot.slane %v533, %v541
      %v545 = vmul.f32 %v532, %v538
      %v546 = vmul.f32 %v531, %v542
      %547 = vst [vmem:[#allocation2 + $0x10] sm:$0xff] %v545
      %548 = vst [vmem:[#allocation2 + $0x18] sm:$0xff] %v546
      %549 = vrot.lane.b32.xlu0 %v503, 15
      %v550 = vpop.permute.xlu0 %549
      %551 = vrot.lane.b32.xlu0 %v504, 15
      %v552 = vpop.permute.xlu0 %551
      %v553 = vsel %vm265, %v550, %v552
      %v554 = vsel %vm265, %v552, %v550
      %v555 = vld [vmem:[%s268] ss:$8 sm:$0x3]
      %v557 = vlaneseq
      %v558 = vshrl.u32 %v557, 7
      %v559 = vsub.s32 0, %v558
      %v560 = vrot.slane %v555, %v559
      %v561 = vlaneseq
      %v562 = vshrl.u32 %v561, 7
      %v563 = vsub.s32 1, %v562
      %v564 = vrot.slane %v555, %v563
      %v567 = vmul.f32 %v554, %v560
      %v568 = vmul.f32 %v553, %v564
      %569 = vst [vmem:[#allocation2 + $0x20] sm:$0xff] %v567
      %570 = vst [vmem:[#allocation2 + $0x28] sm:$0xff] %v568
      %571 = vrot.lane.b32.xlu0 %v503, 1
      %v572 = vpop.permute.xlu0 %571
      %573 = vrot.lane.b32.xlu0 %v504, 1
      %v574 = vpop.permute.xlu0 %573
      %v575 = vsel %vm289, %v572, %v574
      %v576 = vsel %vm289, %v574, %v572
      %v577 = vld [vmem:[%s292] ss:$8 sm:$0x3]
      %v579 = vlaneseq
      %v580 = vshrl.u32 %v579, 7
      %v581 = vsub.s32 0, %v580
      %v582 = vrot.slane %v577, %v581
      %v583 = vlaneseq
      %v584 = vshrl.u32 %v583, 7
      %v585 = vsub.s32 1, %v584
      %v586 = vrot.slane %v577, %v585
      %v589 = vmul.f32 %v576, %v582
      %v590 = vmul.f32 %v575, %v586
      %591 = vst [vmem:[#allocation2 + $0x30] sm:$0xff] %v589
      %592 = vst [vmem:[#allocation2 + $0x38] sm:$0xff] %v590
      %593 = vst [vmem:[#allocation2 + $0x40] sm:$0xff] %v503
      %594 = vst [vmem:[#allocation2 + $0x48] sm:$0xff] %v504
      %595 = vrot.lane.b32.xlu0 %v503, 127
      %v596 = vpop.permute.xlu0 %595
      %597 = vrot.lane.b32.xlu0 %v504, 127
      %v598 = vpop.permute.xlu0 %597
      %v599 = vsel %vm315, %v596, %v598
      %v600 = vsel %vm315, %v598, %v596
      %v601 = vld [vmem:[%s318] ss:$8 sm:$0x3]
      %v603 = vlaneseq
      %v604 = vshrl.u32 %v603, 7
      %v605 = vsub.s32 0, %v604
      %v606 = vrot.slane %v601, %v605
      %v607 = vlaneseq
      %v608 = vshrl.u32 %v607, 7
      %v609 = vsub.s32 1, %v608
      %v610 = vrot.slane %v601, %v609
      %v613 = vmul.f32 %v599, %v606
      %v614 = vmul.f32 %v600, %v610
      %615 = vst [vmem:[#allocation2 + $0x50] sm:$0xff] %v613
      %616 = vst [vmem:[#allocation2 + $0x58] sm:$0xff] %v614
      %617 = vrot.lane.b32.xlu0 %v503, 113
      %v618 = vpop.permute.xlu0 %617
      %619 = vrot.lane.b32.xlu0 %v504, 113
      %v620 = vpop.permute.xlu0 %619
      %v621 = vsel %vm339, %v618, %v620
      %v622 = vsel %vm339, %v620, %v618
      %v623 = vld [vmem:[%s342] ss:$8 sm:$0x3]
      %v625 = vlaneseq
      %v626 = vshrl.u32 %v625, 7
      %v627 = vsub.s32 0, %v626
      %v628 = vrot.slane %v623, %v627
      %v629 = vlaneseq
      %v630 = vshrl.u32 %v629, 7
      %v631 = vsub.s32 1, %v630
      %v632 = vrot.slane %v623, %v631
      %v635 = vmul.f32 %v621, %v628
      %v636 = vmul.f32 %v622, %v632
      %637 = vst [vmem:[#allocation2 + $0x60] sm:$0xff] %v635
      %638 = vst [vmem:[#allocation2 + $0x68] sm:$0xff] %v636
      %639 = vrot.lane.b32.xlu0 %v503, 112
      %v640 = vpop.permute.xlu0 %639
      %641 = vrot.lane.b32.xlu0 %v504, 112
      %v642 = vpop.permute.xlu0 %641
      %v643 = vsel %vm363, %v640, %v642
      %v644 = vsel %vm363, %v642, %v640
      %v645 = vld [vmem:[%s366] ss:$8 sm:$0x3]
      %v647 = vlaneseq
      %v648 = vshrl.u32 %v647, 7
      %v649 = vsub.s32 0, %v648
      %v650 = vrot.slane %v645, %v649
      %v651 = vlaneseq
      %v652 = vshrl.u32 %v651, 7
      %v653 = vsub.s32 1, %v652
      %v654 = vrot.slane %v645, %v653
      %v657 = vmul.f32 %v643, %v650
      %v658 = vmul.f32 %v644, %v654
      %659 = vst [vmem:[#allocation2 + $0x70] sm:$0xff] %v657
      %660 = vst [vmem:[#allocation2 + $0x78] sm:$0xff] %v658
      %661 = vrot.lane.b32.xlu0 %v503, 111
      %v662 = vpop.permute.xlu0 %661
      %663 = vrot.lane.b32.xlu0 %v504, 111
      %v664 = vpop.permute.xlu0 %663
      %v665 = vsel %vm387, %v662, %v664
      %v666 = vsel %vm387, %v664, %v662
      %v667 = vld [vmem:[%s390] ss:$8 sm:$0x3]
      %v669 = vlaneseq
      %v670 = vshrl.u32 %v669, 7
      %v671 = vsub.s32 0, %v670
      %v672 = vrot.slane %v667, %v671
      %v673 = vlaneseq
      %v674 = vshrl.u32 %v673, 7
      %v675 = vsub.s32 1, %v674
      %v676 = vrot.slane %v667, %v675
      %v679 = vmul.f32 %v665, %v672
      %v680 = vmul.f32 %v666, %v676
      %681 = vst [vmem:[#allocation2 + $0x80] sm:$0xff] %v679
      %682 = vst [vmem:[#allocation2 + $0x88] sm:$0xff] %v680
      %v683 = vld [vmem:[%s2] sm:$0xff]
      %v684 = vld [vmem:[#allocation2] sm:$0xff]
      %v685 = vld [vmem:[#allocation2 + $0x8] sm:$0xff]
      %v686 = vld [vmem:[#allocation2 + $0x10] sm:$0xff]
      %v687 = vld [vmem:[#allocation2 + $0x18] sm:$0xff]
      %v688 = vld [vmem:[#allocation2 + $0x20] sm:$0xff]
      %v689 = vld [vmem:[#allocation2 + $0x28] sm:$0xff]
      %v690 = vld [vmem:[#allocation2 + $0x30] sm:$0xff]
      %v691 = vld [vmem:[#allocation2 + $0x38] sm:$0xff]
      %v692 = vld [vmem:[#allocation2 + $0x40] sm:$0xff]
      %v693 = vld [vmem:[#allocation2 + $0x48] sm:$0xff]
      %v694 = vld [vmem:[#allocation2 + $0x50] sm:$0xff]
      %v695 = vld [vmem:[#allocation2 + $0x58] sm:$0xff]
      %v696 = vld [vmem:[#allocation2 + $0x60] sm:$0xff]
      %v697 = vld [vmem:[#allocation2 + $0x68] sm:$0xff]
      %v698 = vld [vmem:[#allocation2 + $0x70] sm:$0xff]
      %v699 = vld [vmem:[#allocation2 + $0x78] sm:$0xff]
      %v700 = vld [vmem:[#allocation2 + $0x80] sm:$0xff]
      %v701 = vld [vmem:[#allocation2 + $0x88] sm:$0xff]
      %v702 = vld [vmem:[#allocation2 + $0x90] sm:$0xff]
      %v703 = vld [vmem:[#allocation2 + $0x98] sm:$0xff]
      %v705 = vsel %vm428, %v683, 0
      %707 = vmatprep.subr.mxu0 %v685
      %708 = vmatpush1.msra.mxu0 %v684
      %709 = vmatprep.subr.mxu0 %v687
      %710 = vmatpush1.msra.mxu0 %v686
      %711 = vmatprep.subr.mxu0 %v689
      %712 = vmatpush1.msra.mxu0 %v688
      %713 = vmatprep.subr.mxu0 %v691
      %714 = vmatpush1.msra.mxu0 %v690
      %715 = vmatprep.subr.mxu0 %v693
      %716 = vmatpush1.msra.mxu0 %v692
      %717 = vmatprep.subr.mxu0 %v695
      %718 = vmatpush1.msra.mxu0 %v694
      %719 = vmatprep.subr.mxu0 %v697
      %720 = vmatpush1.msra.mxu0 %v696
      %721 = vmatprep.subr.mxu0 %v699
      %722 = vmatpush1.msra.mxu0 %v698
      %723 = vmatprep.subr.mxu0 %v701
      %724 = vmatpush1.msra.mxu0 %v700
      %725 = vmatprep.subr.mxu0 %v703
      %726 = vmatpush1.msra.mxu0 %v702
      %727 = vmatprep.subr.mxu0 0.0
      %728 = vmatpush1.msra.mxu0 0.0
      %729 = vmatprep.subr.mxu0 0.0
      %730 = vmatpush1.msra.mxu0 0.0
      %731 = vmatprep.subr.mxu0 0.0
      %732 = vmatpush1.msra.mxu0 0.0
      %733 = vmatprep.subr.mxu0 0.0
      %734 = vmatpush1.msra.mxu0 0.0
      %735 = vmatprep.subr.mxu0 0.0
      %736 = vmatpush1.msra.mxu0 0.0
      %737 = vmatprep.subr.mxu0 0.0
      %738 = vmatpush1.msra.mxu0 0.0
      %739 = vmatprep.subr.mxu0 0.0
      %740 = vmatpush1.msra.mxu0 0.0
      %741 = vmatprep.subr.mxu0 0.0
      %742 = vmatpush1.msra.mxu0 0.0
      %743 = vmatprep.subr.mxu0 0.0
      %744 = vmatpush1.msra.mxu0 0.0
      %745 = vmatprep.subr.mxu0 0.0
      %746 = vmatpush1.msra.mxu0 0.0
      %747 = vmatprep.subr.mxu0 0.0
      %748 = vmatpush1.msra.mxu0 0.0
      %749 = vmatprep.subr.mxu0 0.0
      %750 = vmatpush1.msra.mxu0 0.0
      %751 = vmatprep.subr.mxu0 0.0
      %752 = vmatpush1.msra.mxu0 0.0
      %753 = vmatprep.subr.mxu0 0.0
      %754 = vmatpush1.msra.mxu0 0.0
      %755 = vmatprep.subr.mxu0 0.0
      %756 = vmatpush1.msra.mxu0 0.0
      %757 = vmatprep.subr.mxu0 0.0
      %758 = vmatpush1.msra.mxu0 0.0
      %759 = vmatprep.subr.mxu0 0.0
      %760 = vmatpush1.msra.mxu0 0.0
      %761 = vmatprep.subr.mxu0 0.0
      %762 = vmatpush1.msra.mxu0 0.0
      %763 = vmatprep.subr.mxu0 0.0
      %764 = vmatpush1.msra.mxu0 0.0
      %765 = vmatprep.subr.mxu0 0.0
      %766 = vmatpush1.msra.mxu0 0.0
      %767 = vmatprep.subr.mxu0 0.0
      %768 = vmatpush1.msra.mxu0 0.0
      %769 = vmatprep.subr.mxu0 0.0
      %770 = vmatpush1.msra.mxu0 0.0
      %771 = vmatprep.mubr.f32.mxu0 0.0
      %772 = vmatmul.mubr.f32.gmra.mrb[0].mxu0 %v705
      %v773 = vpop.f32.mrb[0].mxu0
      %v774 = vadd.f32 %v201, %v773
      %v775 = vpop.f32.mrb[0].mxu0
      %v776 = vadd.f32 %v202, %v775
      %777 = vdwg.mxu0
      %778 = vst [vmem:[%s199] sm:$0xff] %v774
      %779 = vst [vmem:[%s199 + $0x8] sm:$0xff] %v776
      %s780 = smul.u32 2, %s15
      %p781 = scmp.lt.s32.totalorder %s780, 3
      %s782 = scalar_select %p781, %s780, 3
      %s783 = smul.addr %s782, 8
      %s784 = scalar_lea.vmem %s4, %s783
      // Predicated region
      $region37: #{basic_block_forward.1} parent=35 // pred_check
        %p785 = pneg %p122
      $region38: #{basic_block_forward.1} parent=35 // pred_check_branch
        %787 = sbr.rel (%p785) target = $region40
      $region39: #{basic_block_forward.1} parent=35 // pred_region
        %s788 = smul.u32 2, %s15
      $region40: #{basic_block_forward.1} parent=35 // pred_fallthru
        _
    $region36: #{basic_block_forward.1} parent=5 // pred_fallthru
      _
    %p789 = scmp.le.s32.totalorder 2, %s10
    // Predicated region
    $region41: #{basic_block_forward.1} parent=5 // pred_check
      %p790 = pneg %p789
    $region42: #{basic_block_forward.1} parent=5 // pred_check_branch
      %792 = sbr.rel (%p790) target = $region44
    $region43: #{basic_block_forward.1} parent=5 // pred_region
      %s793 = ssub.s32 %s10, 2
      // Predicated region
      $region45: #{basic_block_forward.1} parent=43 // pred_check
        %p794 = pneg %p128
      $region46: #{basic_block_forward.1} parent=43 // pred_check_branch
        %796 = sbr.rel (%p794) target = $region48
      $region47: #{basic_block_forward.1} parent=43 // pred_region
        %s797 = smul.u32 2, %s16
        %p798 = scmp.lt.s32.totalorder %s797, 3
        %s799 = scalar_select %p798, %s797, 3
        %s800 = smul.addr %s799, 8
        %s801 = scalar_lea.vmem %s4, %s800
      $region48: #{basic_block_forward.1} parent=43 // pred_fallthru
        _
    $region44: #{basic_block_forward.1} parent=5 // pred_fallthru
      _
  $region6: #{basic_block_forward.1} parent=0 // loop_footer
    %s14 = sadd.s32 1, %s10
  $region7: #{basic_block_forward.1} parent=0 // loop_footer_branch
    %9 = sbr.rel target = $region3
  $region8: #{basic_block_forward.1} parent=0 // loop_exit
    _

</llo_original>
